<compile_context>
chip_gen: v7x
topology: tpu7x:2x2x1
jax: 0.10.0
libtpu: 0.0.40
codegen_flags: <defaults>
</compile_context>

<pallas_src>
import functools
import math

import jax
import jax.numpy as jnp
from jax import lax
from jax.experimental import pallas as pl
from jax.experimental.pallas import tpu as pltpu


LR_MUL = 0.01
BIAS_SCALE = 0.01
AMP = 2.0 ** 0.5
NEG_SLOPE = 0.2
EPS = 1e-8
N_LAYERS = 8


# --------------------------------------------------------------------------- #
# Kernel
# --------------------------------------------------------------------------- #
def _mapping_kernel(x_ref, w_ref, b_ref, o_ref):
    """Whole 8-layer mapping network on one batch tile.

    x_ref : (TB, Z)    f32   latent vectors (one batch tile)
    w_ref : (8, Z, Z)  bf16  pre-scaled weights, (in_dim, out_dim) layout
                             (lr_mul/sqrt(Z) and AMP already folded in)
    b_ref : (8, Z)     f32   pre-scaled biases (bias_scale and AMP folded in)
    o_ref : (TB, Z)    f32   mapped latent (pre-broadcast)
    """
    x = x_ref[...].astype(jnp.float32)

    # noise_normalization: pixel norm over the feature dimension.
    x = x * lax.rsqrt(jnp.mean(x * x, axis=-1, keepdims=True) + EPS)

    b_all = b_ref[...]                      # (8, Z) f32 — tiny, load once

    # 8 layers, static Python unroll (tiny trip count).
    for i in range(w_ref.shape[0]):
        y = jnp.dot(x.astype(w_ref.dtype), w_ref[i],
                    preferred_element_type=jnp.float32)     # bf16 MXU, f32 acc
        y = y + b_all[i][None, :]                            # bias (AMP folded)
        x = jnp.maximum(y, NEG_SLOPE * y)                    # LeakyReLU(0.2)

    o_ref[...] = x.astype(o_ref.dtype)


# --------------------------------------------------------------------------- #
# Wrapper
# --------------------------------------------------------------------------- #
@functools.partial(jax.jit, static_argnames=("style_num", "block_b"))
def mapping_network(x, w_f, b_f, *, style_num, block_b=None):
    """x: (B, z_dim); (w_f, b_f) are the folded params from fold_params()."""
    B, Z = x.shape
    L, _, W = w_f.shape

    # Batch tile: single tile for small B, otherwise an 8-aligned tile that
    # divides B (blocks must be (8,128)-aligned or equal to full dims).
    if block_b is None:
        block_b = B if B <= 2048 else 2048
    if block_b != B:
        assert B % block_b == 0 and block_b % 8 == 0, (B, block_b)
    num_blocks = B // block_b

    # VMEM budget: resident weights/biases + double-buffered in/out tiles.
    weight_bytes = int(w_f.size) * 2
    bias_bytes = int(b_f.size) * 4
    act_bytes = block_b * max(Z, W) * 4
    needed = weight_bytes + bias_bytes + 4 * act_bytes + (4 << 20)
    vmem_limit = int(min(max(needed, 16 << 20), 48 << 20))  # headroom on v7x 64 MiB

    grid_spec = pltpu.PrefetchScalarGridSpec(
        num_scalar_prefetch=0,
        grid=(num_blocks,),
        in_specs=[
            pl.BlockSpec((block_b, Z), lambda i: (i, 0)),      # activations: tiled
            pl.BlockSpec((L, Z, W), lambda i: (0, 0, 0)),      # weights: resident
            pl.BlockSpec((L, W), lambda i: (0, 0)),            # biases:  resident
        ],
        out_specs=pl.BlockSpec((block_b, W), lambda i: (i, 0)),
    )

    w_out = pl.pallas_call(
        _mapping_kernel,
        out_shape=jax.ShapeDtypeStruct((B, W), jnp.float32),
        grid_spec=grid_spec,
        compiler_params=pltpu.CompilerParams(
            dimension_semantics=("parallel",),
            vmem_limit_bytes=vmem_limit,
        ),
    )(x, w_f, b_f)

    # x.view(B, 1, W).expand(B, style_num, W) — pure broadcast, done as glue.
    return jnp.broadcast_to(w_out[:, None, :], (B, style_num, W))


# --------------------------------------------------------------------------- #
# Parameters
# --------------------------------------------------------------------------- #
def init_params(key, z_dim, w_dim):
    """Raw torch-style parameters (weights stored as (in_dim, out_dim)).

    EqualizedLinear weights ~ N(0,1)/lr_mul (standard equalized-lr init);
    biases are small deterministic normals so the bias path is exercised.
    """
    keys = jax.random.split(key, 4)
    w_hidden = jax.random.normal(keys[0], (7, z_dim, z_dim), jnp.float32) / LR_MUL
    b_hidden = jax.random.normal(keys[1], (7, 1, z_dim), jnp.float32)
    w_last = jax.random.normal(keys[2], (z_dim, w_dim), jnp.float32) / LR_MUL
    b_last = jax.random.normal(keys[3], (1, w_dim), jnp.float32)
    return w_hidden, b_hidden, w_last, b_last


def fold_params(w_hidden, b_hidden, w_last, b_last):
    """One-time parameter transform (NOT per-call):

    * merge the 7 hidden layers and the last layer into one (8, Z, Z) / (8, Z),
    * fold the equalized-lr runtime scale (lr_mul / sqrt(in_dim)) AND the
      Amplify factor sqrt(2) into the weights,
    * fold bias_scale AND sqrt(2) into the biases,
    * quantize the fully-folded weights to bf16 (biases stay f32).
    """
    z_dim = w_hidden.shape[1]
    w_dim = w_last.shape[1]
    # TODO(synk): z_dim != w_dim would need a separate (Z, W) tail layer path.
    assert w_dim == z_dim, "merged-weight kernel assumes z_dim == w_dim"
    w_scale = LR_MUL / (z_dim ** 0.5)

    w_all = jnp.concatenate([w_hidden, w_last[None]], axis=0)          # (8, Z, Z)
    b_all = jnp.concatenate(
        [b_hidden.reshape(7, z_dim), b_last.reshape(1, w_dim)], axis=0)  # (8, Z)

    w_f = (w_all * (w_scale * AMP)).astype(jnp.bfloat16)
    b_f = (b_all * (BIAS_SCALE * AMP)).astype(jnp.float32)
    return w_f, b_f


# --------------------------------------------------------------------------- #
# References
# --------------------------------------------------------------------------- #
def reference_forward_folded(x, w_f, b_f, style_num):
    """Pure-JAX reference of exactly the kernel's (folded, bf16) math."""
    x = x.astype(jnp.float32)
    x = x * lax.rsqrt(jnp.mean(x * x, axis=-1, keepdims=True) + EPS)
    for i in range(w_f.shape[0]):
        y = jnp.dot(x.astype(jnp.bfloat16), w_f[i],
                    preferred_element_type=jnp.float32)
        y = y + b_f[i][None, :]
        x = jnp.maximum(y, NEG_SLOPE * y)
    return jnp.broadcast_to(x[:, None, :], (x.shape[0], style_num, x.shape[1]))


def reference_forward_f32(x, w_hidden, b_hidden, w_last, b_last, style_num):
    """Full-precision, unfolded reference of the original torch forward."""
    x = x * lax.rsqrt(jnp.mean(x * x, axis=-1, keepdims=True) + EPS)
    z_dim = w_hidden.shape[1]
    w_scale = LR_MUL / (z_dim ** 0.5)
    for i in range(w_hidden.shape[0]):
        x = x @ (w_hidden[i] * w_scale) + b_hidden[i] * BIAS_SCALE
        x = x * AMP
        x = jnp.where(x >= 0, x, NEG_SLOPE * x)
    x = x @ (w_last * w_scale) + b_last * BIAS_SCALE
    x = x * AMP
    x = jnp.where(x >= 0, x, NEG_SLOPE * x)
    return jnp.broadcast_to(x[:, None, :], (x.shape[0], style_num, x.shape[1]))


# --------------------------------------------------------------------------- #
# Main
# --------------------------------------------------------------------------- #
if __name__ == "__main__":
    # Small deterministic config consistent with the module:
    #   z_dim = w_dim = 32, start_size = 16, end_size = 256
    #   -> style_num = int(log2(256/16)) * 2 + 2 = 10
    batch, z_dim, w_dim = 2, 32, 32
    start_size, end_size = 16, 256
    style_num = int(math.log2(end_size / start_size)) * 2 + 2

    key = jax.random.PRNGKey(0)
    k_x, k_p = jax.random.split(key)
    x = jax.random.normal(k_x, (batch, z_dim), jnp.float32)

    raw_params = init_params(k_p, z_dim, w_dim)
    w_f, b_f = fold_params(*raw_params)               # one-time transform

    out = mapping_network(x, w_f, b_f, style_num=style_num)
    out = jax.block_until_ready(out)

    assert out.shape == (batch, style_num, w_dim), out.shape

    # Tight check: same folded bf16 math, validates the Pallas lowering.
    ref_same = reference_forward_folded(x, w_f, b_f, style_num)
    assert jnp.allclose(out, ref_same, atol=1e-3, rtol=1e-3), \
        "mismatch vs folded-precision reference"

    # Loose check: full-f32, unfolded torch semantics (bf16 weight quantization
    # + scale folding change rounding slightly).
    ref_f32 = reference_forward_f32(x, *raw_params, style_num)
    assert jnp.allclose(out, ref_f32, atol=5e-2, rtol=5e-2), \
        "mismatch vs f32 torch-semantics reference"

    print("KERNEL_OK")
</pallas_src>

<mosaic_0001>
module attributes {stable_mosaic.version = 11 : i64} {
  func.func @_mapping_kernel(%arg0: i32, %arg1: memref<2x32xf32, #tpu.memory_space<vmem>>, %arg2: memref<8x32x32xbf16, #tpu.memory_space<vmem>>, %arg3: memref<8x32xf32, #tpu.memory_space<vmem>>, %arg4: memref<2x32xf32, #tpu.memory_space<vmem>>) attributes {dimension_semantics = [#tpu.dimension_semantics<parallel>], iteration_bounds = array<i64: 1>, scalar_prefetch = 0 : i64, scratch_operands = 0 : i64, tpu.core_type = #tpu.core_type<tc>, window_params = [{transform_indices = @transform_0, window_bounds = array<i64: 2, 32>}, {pipeline_mode = #tpu.pipeline_mode<synchronous>, transform_indices = @transform_1, window_bounds = array<i64: 8, 32, 32>}, {pipeline_mode = #tpu.pipeline_mode<synchronous>, transform_indices = @transform_2, window_bounds = array<i64: 8, 32>}, {transform_indices = @transform_3, window_bounds = array<i64: 2, 32>}]} {
    %c0 = arith.constant 0 : index
    %c0_0 = arith.constant 0 : index
    %0 = vector.load %arg1[%c0, %c0_0] : memref<2x32xf32, #tpu.memory_space<vmem>>, vector<2x32xf32>
    %1 = arith.mulf %0, %0 : vector<2x32xf32>
    %cst = arith.constant dense<0.000000e+00> : vector<2xf32>
    %2 = vector.multi_reduction <add>, %1, %cst [1] : vector<2x32xf32> to vector<2xf32>
    %3 = vector.shape_cast %2 : vector<2xf32> to vector<2x1xf32>
    %cst_1 = arith.constant 3.200000e+01 : f32
    %4 = vector.broadcast %cst_1 : f32 to vector<2x1xf32>
    %5 = arith.divf %3, %4 : vector<2x1xf32>
    %cst_2 = arith.constant 9.99999993E-9 : f32
    %6 = vector.broadcast %cst_2 : f32 to vector<2x1xf32>
    %7 = arith.addf %5, %6 : vector<2x1xf32>
    %8 = math.rsqrt %7 : vector<2x1xf32>
    %9 = vector.broadcast %8 : vector<2x1xf32> to vector<2x32xf32>
    %10 = arith.mulf %0, %9 : vector<2x32xf32>
    %c0_3 = arith.constant 0 : index
    %c0_4 = arith.constant 0 : index
    %11 = vector.load %arg3[%c0_3, %c0_4] : memref<8x32xf32, #tpu.memory_space<vmem>>, vector<8x32xf32>
    %12 = arith.truncf %10 : vector<2x32xf32> to vector<2x32xbf16>
    %c0_5 = arith.constant 0 : index
    %c0_6 = arith.constant 0 : index
    %c0_7 = arith.constant 0 : index
    %13 = vector.load %arg2[%c0_5, %c0_6, %c0_7] : memref<8x32x32xbf16, #tpu.memory_space<vmem>>, vector<1x32x32xbf16>
    %14 = vector.shape_cast %13 : vector<1x32x32xbf16> to vector<32x32xbf16>
    %cst_8 = arith.constant dense<0.000000e+00> : vector<2x32xf32>
    %15 = tpu.matmul %12, %14, %cst_8 {dimension_numbers = #tpu.dot_dimension_numbers<[1], [0], [0], [1], [0, 0, 1, 1], [], []>} : vector<2x32xbf16>, vector<32x32xbf16>, vector<2x32xf32> -> vector<2x32xf32>
    %16 = vector.extract_strided_slice %11 {offsets = [0, 0], sizes = [1, 32], strides = [1, 1]} : vector<8x32xf32> to vector<1x32xf32>
    %17 = vector.shape_cast %16 : vector<1x32xf32> to vector<32xf32>
    %18 = vector.shape_cast %17 : vector<32xf32> to vector<1x32xf32>
    %19 = vector.broadcast %18 : vector<1x32xf32> to vector<2x32xf32>
    %20 = arith.addf %15, %19 : vector<2x32xf32>
    %cst_9 = arith.constant 2.000000e-01 : f32
    %21 = vector.broadcast %cst_9 : f32 to vector<2x32xf32>
    %22 = arith.mulf %21, %20 : vector<2x32xf32>
    %23 = arith.maximumf %20, %22 : vector<2x32xf32>
    %24 = arith.truncf %23 : vector<2x32xf32> to vector<2x32xbf16>
    %c1 = arith.constant 1 : index
    %c0_10 = arith.constant 0 : index
    %c0_11 = arith.constant 0 : index
    %25 = vector.load %arg2[%c1, %c0_10, %c0_11] : memref<8x32x32xbf16, #tpu.memory_space<vmem>>, vector<1x32x32xbf16>
    %26 = vector.shape_cast %25 : vector<1x32x32xbf16> to vector<32x32xbf16>
    %cst_12 = arith.constant dense<0.000000e+00> : vector<2x32xf32>
    %27 = tpu.matmul %24, %26, %cst_12 {dimension_numbers = #tpu.dot_dimension_numbers<[1], [0], [0], [1], [0, 0, 1, 1], [], []>} : vector<2x32xbf16>, vector<32x32xbf16>, vector<2x32xf32> -> vector<2x32xf32>
    %28 = vector.extract_strided_slice %11 {offsets = [1, 0], sizes = [1, 32], strides = [1, 1]} : vector<8x32xf32> to vector<1x32xf32>
    %29 = vector.shape_cast %28 : vector<1x32xf32> to vector<32xf32>
    %30 = vector.shape_cast %29 : vector<32xf32> to vector<1x32xf32>
    %31 = vector.broadcast %30 : vector<1x32xf32> to vector<2x32xf32>
    %32 = arith.addf %27, %31 : vector<2x32xf32>
    %cst_13 = arith.constant 2.000000e-01 : f32
    %33 = vector.broadcast %cst_13 : f32 to vector<2x32xf32>
    %34 = arith.mulf %33, %32 : vector<2x32xf32>
    %35 = arith.maximumf %32, %34 : vector<2x32xf32>
    %36 = arith.truncf %35 : vector<2x32xf32> to vector<2x32xbf16>
    %c2 = arith.constant 2 : index
    %c0_14 = arith.constant 0 : index
    %c0_15 = arith.constant 0 : index
    %37 = vector.load %arg2[%c2, %c0_14, %c0_15] : memref<8x32x32xbf16, #tpu.memory_space<vmem>>, vector<1x32x32xbf16>
    %38 = vector.shape_cast %37 : vector<1x32x32xbf16> to vector<32x32xbf16>
    %cst_16 = arith.constant dense<0.000000e+00> : vector<2x32xf32>
    %39 = tpu.matmul %36, %38, %cst_16 {dimension_numbers = #tpu.dot_dimension_numbers<[1], [0], [0], [1], [0, 0, 1, 1], [], []>} : vector<2x32xbf16>, vector<32x32xbf16>, vector<2x32xf32> -> vector<2x32xf32>
    %40 = vector.extract_strided_slice %11 {offsets = [2, 0], sizes = [1, 32], strides = [1, 1]} : vector<8x32xf32> to vector<1x32xf32>
    %41 = vector.shape_cast %40 : vector<1x32xf32> to vector<32xf32>
    %42 = vector.shape_cast %41 : vector<32xf32> to vector<1x32xf32>
    %43 = vector.broadcast %42 : vector<1x32xf32> to vector<2x32xf32>
    %44 = arith.addf %39, %43 : vector<2x32xf32>
    %cst_17 = arith.constant 2.000000e-01 : f32
    %45 = vector.broadcast %cst_17 : f32 to vector<2x32xf32>
    %46 = arith.mulf %45, %44 : vector<2x32xf32>
    %47 = arith.maximumf %44, %46 : vector<2x32xf32>
    %48 = arith.truncf %47 : vector<2x32xf32> to vector<2x32xbf16>
    %c3 = arith.constant 3 : index
    %c0_18 = arith.constant 0 : index
    %c0_19 = arith.constant 0 : index
    %49 = vector.load %arg2[%c3, %c0_18, %c0_19] : memref<8x32x32xbf16, #tpu.memory_space<vmem>>, vector<1x32x32xbf16>
    %50 = vector.shape_cast %49 : vector<1x32x32xbf16> to vector<32x32xbf16>
    %cst_20 = arith.constant dense<0.000000e+00> : vector<2x32xf32>
    %51 = tpu.matmul %48, %50, %cst_20 {dimension_numbers = #tpu.dot_dimension_numbers<[1], [0], [0], [1], [0, 0, 1, 1], [], []>} : vector<2x32xbf16>, vector<32x32xbf16>, vector<2x32xf32> -> vector<2x32xf32>
    %52 = vector.extract_strided_slice %11 {offsets = [3, 0], sizes = [1, 32], strides = [1, 1]} : vector<8x32xf32> to vector<1x32xf32>
    %53 = vector.shape_cast %52 : vector<1x32xf32> to vector<32xf32>
    %54 = vector.shape_cast %53 : vector<32xf32> to vector<1x32xf32>
    %55 = vector.broadcast %54 : vector<1x32xf32> to vector<2x32xf32>
    %56 = arith.addf %51, %55 : vector<2x32xf32>
    %cst_21 = arith.constant 2.000000e-01 : f32
    %57 = vector.broadcast %cst_21 : f32 to vector<2x32xf32>
    %58 = arith.mulf %57, %56 : vector<2x32xf32>
    %59 = arith.maximumf %56, %58 : vector<2x32xf32>
    %60 = arith.truncf %59 : vector<2x32xf32> to vector<2x32xbf16>
    %c4 = arith.constant 4 : index
    %c0_22 = arith.constant 0 : index
    %c0_23 = arith.constant 0 : index
    %61 = vector.load %arg2[%c4, %c0_22, %c0_23] : memref<8x32x32xbf16, #tpu.memory_space<vmem>>, vector<1x32x32xbf16>
    %62 = vector.shape_cast %61 : vector<1x32x32xbf16> to vector<32x32xbf16>
    %cst_24 = arith.constant dense<0.000000e+00> : vector<2x32xf32>
    %63 = tpu.matmul %60, %62, %cst_24 {dimension_numbers = #tpu.dot_dimension_numbers<[1], [0], [0], [1], [0, 0, 1, 1], [], []>} : vector<2x32xbf16>, vector<32x32xbf16>, vector<2x32xf32> -> vector<2x32xf32>
    %64 = vector.extract_strided_slice %11 {offsets = [4, 0], sizes = [1, 32], strides = [1, 1]} : vector<8x32xf32> to vector<1x32xf32>
    %65 = vector.shape_cast %64 : vector<1x32xf32> to vector<32xf32>
    %66 = vector.shape_cast %65 : vector<32xf32> to vector<1x32xf32>
    %67 = vector.broadcast %66 : vector<1x32xf32> to vector<2x32xf32>
    %68 = arith.addf %63, %67 : vector<2x32xf32>
    %cst_25 = arith.constant 2.000000e-01 : f32
    %69 = vector.broadcast %cst_25 : f32 to vector<2x32xf32>
    %70 = arith.mulf %69, %68 : vector<2x32xf32>
    %71 = arith.maximumf %68, %70 : vector<2x32xf32>
    %72 = arith.truncf %71 : vector<2x32xf32> to vector<2x32xbf16>
    %c5 = arith.constant 5 : index
    %c0_26 = arith.constant 0 : index
    %c0_27 = arith.constant 0 : index
    %73 = vector.load %arg2[%c5, %c0_26, %c0_27] : memref<8x32x32xbf16, #tpu.memory_space<vmem>>, vector<1x32x32xbf16>
    %74 = vector.shape_cast %73 : vector<1x32x32xbf16> to vector<32x32xbf16>
    %cst_28 = arith.constant dense<0.000000e+00> : vector<2x32xf32>
    %75 = tpu.matmul %72, %74, %cst_28 {dimension_numbers = #tpu.dot_dimension_numbers<[1], [0], [0], [1], [0, 0, 1, 1], [], []>} : vector<2x32xbf16>, vector<32x32xbf16>, vector<2x32xf32> -> vector<2x32xf32>
    %76 = vector.extract_strided_slice %11 {offsets = [5, 0], sizes = [1, 32], strides = [1, 1]} : vector<8x32xf32> to vector<1x32xf32>
    %77 = vector.shape_cast %76 : vector<1x32xf32> to vector<32xf32>
    %78 = vector.shape_cast %77 : vector<32xf32> to vector<1x32xf32>
    %79 = vector.broadcast %78 : vector<1x32xf32> to vector<2x32xf32>
    %80 = arith.addf %75, %79 : vector<2x32xf32>
    %cst_29 = arith.constant 2.000000e-01 : f32
    %81 = vector.broadcast %cst_29 : f32 to vector<2x32xf32>
    %82 = arith.mulf %81, %80 : vector<2x32xf32>
    %83 = arith.maximumf %80, %82 : vector<2x32xf32>
    %84 = arith.truncf %83 : vector<2x32xf32> to vector<2x32xbf16>
    %c6 = arith.constant 6 : index
    %c0_30 = arith.constant 0 : index
    %c0_31 = arith.constant 0 : index
    %85 = vector.load %arg2[%c6, %c0_30, %c0_31] : memref<8x32x32xbf16, #tpu.memory_space<vmem>>, vector<1x32x32xbf16>
    %86 = vector.shape_cast %85 : vector<1x32x32xbf16> to vector<32x32xbf16>
    %cst_32 = arith.constant dense<0.000000e+00> : vector<2x32xf32>
    %87 = tpu.matmul %84, %86, %cst_32 {dimension_numbers = #tpu.dot_dimension_numbers<[1], [0], [0], [1], [0, 0, 1, 1], [], []>} : vector<2x32xbf16>, vector<32x32xbf16>, vector<2x32xf32> -> vector<2x32xf32>
    %88 = vector.extract_strided_slice %11 {offsets = [6, 0], sizes = [1, 32], strides = [1, 1]} : vector<8x32xf32> to vector<1x32xf32>
    %89 = vector.shape_cast %88 : vector<1x32xf32> to vector<32xf32>
    %90 = vector.shape_cast %89 : vector<32xf32> to vector<1x32xf32>
    %91 = vector.broadcast %90 : vector<1x32xf32> to vector<2x32xf32>
    %92 = arith.addf %87, %91 : vector<2x32xf32>
    %cst_33 = arith.constant 2.000000e-01 : f32
    %93 = vector.broadcast %cst_33 : f32 to vector<2x32xf32>
    %94 = arith.mulf %93, %92 : vector<2x32xf32>
    %95 = arith.maximumf %92, %94 : vector<2x32xf32>
    %96 = arith.truncf %95 : vector<2x32xf32> to vector<2x32xbf16>
    %c7 = arith.constant 7 : index
    %c0_34 = arith.constant 0 : index
    %c0_35 = arith.constant 0 : index
    %97 = vector.load %arg2[%c7, %c0_34, %c0_35] : memref<8x32x32xbf16, #tpu.memory_space<vmem>>, vector<1x32x32xbf16>
    %98 = vector.shape_cast %97 : vector<1x32x32xbf16> to vector<32x32xbf16>
    %cst_36 = arith.constant dense<0.000000e+00> : vector<2x32xf32>
    %99 = tpu.matmul %96, %98, %cst_36 {dimension_numbers = #tpu.dot_dimension_numbers<[1], [0], [0], [1], [0, 0, 1, 1], [], []>} : vector<2x32xbf16>, vector<32x32xbf16>, vector<2x32xf32> -> vector<2x32xf32>
    %100 = vector.extract_strided_slice %11 {offsets = [7, 0], sizes = [1, 32], strides = [1, 1]} : vector<8x32xf32> to vector<1x32xf32>
    %101 = vector.shape_cast %100 : vector<1x32xf32> to vector<32xf32>
    %102 = vector.shape_cast %101 : vector<32xf32> to vector<1x32xf32>
    %103 = vector.broadcast %102 : vector<1x32xf32> to vector<2x32xf32>
    %104 = arith.addf %99, %103 : vector<2x32xf32>
    %cst_37 = arith.constant 2.000000e-01 : f32
    %105 = vector.broadcast %cst_37 : f32 to vector<2x32xf32>
    %106 = arith.mulf %105, %104 : vector<2x32xf32>
    %107 = arith.maximumf %104, %106 : vector<2x32xf32>
    %c0_38 = arith.constant 0 : index
    %c0_39 = arith.constant 0 : index
    %108 = vector.load %arg4[%c0_38, %c0_39] : memref<2x32xf32, #tpu.memory_space<vmem>>, vector<2x32xf32>
    tpu.vector_store %arg4[%c0_38, %c0_39], %107 {strides = array<i32>} : memref<2x32xf32, #tpu.memory_space<vmem>>, vector<2x32xf32>,
    return
  }
  func.func @transform_0(%arg0: i32) -> (i32, i32) {
    %c0_i32 = arith.constant 0 : i32
    %c0_i32_0 = arith.constant 0 : i32
    return %arg0, %c0_i32 : i32, i32
  }
  func.func @transform_1(%arg0: i32) -> (i32, i32, i32) {
    %c0_i32 = arith.constant 0 : i32
    %c0_i32_0 = arith.constant 0 : i32
    %c0_i32_1 = arith.constant 0 : i32
    %c0_i32_2 = arith.constant 0 : i32
    return %c0_i32, %c0_i32_0, %c0_i32_1 : i32, i32, i32
  }
  func.func @transform_2(%arg0: i32) -> (i32, i32) {
    %c0_i32 = arith.constant 0 : i32
    %c0_i32_0 = arith.constant 0 : i32
    %c0_i32_1 = arith.constant 0 : i32
    return %c0_i32, %c0_i32_0 : i32, i32
  }
  func.func @transform_3(%arg0: i32) -> (i32, i32) {
    %c0_i32 = arith.constant 0 : i32
    %c0_i32_0 = arith.constant 0 : i32
    return %arg0, %c0_i32 : i32, i32
  }
}

</mosaic_0001>

<llo_original>
// kernel: mapping_network.1
$region0: #{mapping_network.1}
  #allocation0 [shape = 'u32[]', space=smem, size = 0x4, offset = 0x4, fixed_abs, tag = 'smem constant byte address 0x4 - core index']
  #allocation1 [shape = 'u32[144,128]{1,0:T(1,128)}', space=vmem, size = 0x12000, scoped, tag = 'internal scratch']
  %s0 = inlined_call_operand.hbm [shape: f32[2,32], index: 0, kind: input, shape index: {}]
  %s1 = inlined_call_operand.hbm [shape: bf16[8,32,32], index: 1, kind: input, shape index: {}]
  %s2 = inlined_call_operand.hbm [shape: f32[8,32], index: 2, kind: input, shape index: {}]
  %s3 = inlined_call_operand.vmem [shape: f32[2,32], index: 3, kind: output, shape index: {}]
  %s4 = sld [smem:[#allocation0]]
  $region34: #{mapping_network.1} parent=0
    _
  %s6 = ssub.s32 1, %s4
  %s7 = scalar_select 0, %s6, %s4
  $region1: #{mapping_network.1} parent=0
    #allocation2 [shape = 'u8[1024]{0}', space=vmem, size = 0x400, scoped, tag = 'input window, operand 0, single buffered']
    #allocation3 [shape = 's32[1]{0}', space=sflag, size = 0x4, scoped, tag = 'scoped memory for mapping_network.1']
    #allocation4 [shape = 'u8[65536]{0}', space=vmem, size = 0x10000, scoped, tag = 'input window, operand 1, single buffered']
    #allocation5 [shape = 's32[1]{0}', space=sflag, size = 0x4, scoped, tag = 'scoped memory for mapping_network.1']
    #allocation6 [shape = 'u8[4096]{0}', space=vmem, size = 0x1000, scoped, tag = 'input window, operand 2, single buffered']
    %8 = vsyncpa [#allocation3], 0
    %9 = vsyncpa [#allocation5], 0
    // Predicated region
    $region2: #{mapping_network.1} parent=1 // pred_check
      _
    $region3: #{mapping_network.1} parent=1 // pred_check_branch
      %11 = sbr.rel (0) target = $region5
    $region4: #{mapping_network.1} parent=1 // pred_region
      %s13 = ssub.s32 32, 32
      %14 = vsyncadd [#allocation3], %s13
      %s16 = sshll.u32 [#allocation2], 4
      %s17 = int_to_ptr.vmem [resolvable:$true] %s16
      %19 = dma.hbm_to_vmem [thread:$0]  %s0, 32, %s17, [#allocation3]
    $region5: #{mapping_network.1} parent=1 // pred_fallthru
      _
    // Predicated region
    $region6: #{mapping_network.1} parent=1 // pred_check
      _
    $region7: #{mapping_network.1} parent=1 // pred_check_branch
      %21 = sbr.rel (0) target = $region9
    $region8: #{mapping_network.1} parent=1 // pred_region
      %s23 = ssub.s32 2048, 2048
      %24 = vsyncadd [#allocation5], %s23
      %s25 = sshll.u32 [#allocation4], 4
      %s26 = int_to_ptr.vmem [resolvable:$true] %s25
      %31 = dma.hbm_to_vmem [thread:$0]  %s1, 2048, %s26, [#allocation5], 64, 64, 4
    $region9: #{mapping_network.1} parent=1 // pred_fallthru
      _
    // Predicated region
    $region10: #{mapping_network.1} parent=1 // pred_check
      _
    $region11: #{mapping_network.1} parent=1 // pred_check_branch
      %33 = sbr.rel (0) target = $region13
    $region12: #{mapping_network.1} parent=1 // pred_region
      %s35 = ssub.s32 128, 128
      %36 = vsyncadd [#allocation5], %s35
      %s38 = sshll.u32 [#allocation6], 4
      %s39 = int_to_ptr.vmem [resolvable:$true] %s38
      %41 = dma.hbm_to_vmem [thread:$0]  %s2, 128, %s39, [#allocation5]
    $region13: #{mapping_network.1} parent=1 // pred_fallthru
      _
    // Predicated region
    $region14: #{mapping_network.1} parent=1 // pred_check
      _
    $region15: #{mapping_network.1} parent=1 // pred_check_branch
      %43 = sbr.rel (0) target = $region17
    $region16: #{mapping_network.1} parent=1 // pred_region
      %44 = dma.done [#allocation3], 32
    $region17: #{mapping_network.1} parent=1 // pred_fallthru
      _
    // Predicated region
    $region18: #{mapping_network.1} parent=1 // pred_check
      _
    $region19: #{mapping_network.1} parent=1 // pred_check_branch
      %46 = sbr.rel (0) target = $region21
    $region20: #{mapping_network.1} parent=1 // pred_region
      %47 = dma.done [#allocation5], 2048
    $region21: #{mapping_network.1} parent=1 // pred_fallthru
      _
    // Predicated region
    $region22: #{mapping_network.1} parent=1 // pred_check
      _
    $region23: #{mapping_network.1} parent=1 // pred_check_branch
      %49 = sbr.rel (0) target = $region25
    $region24: #{mapping_network.1} parent=1 // pred_region
      %50 = dma.done [#allocation5], 128
    $region25: #{mapping_network.1} parent=1 // pred_fallthru
      _
    %v52 = vld [vmem:[#allocation2] sm:$0x3]
    %v53 = vmul.f32 %v52, %v52
    %vm54 = vcmask 254976
    %v55 = vsel %vm54, %v53, 0.0
    %56 = vadd.xlane.f32.xlu0 %v55
    %v57 = vpop.xlane.xlu0 %56
    %v58 = vrcp.pop 32.0
    %v59 = vmul.f32 %v57, %v58
    %v60 = vadd.f32 %v59, 1e-08
    %v61 = vrsqrt.pop %v60
    %v62 = vmul.f32 %v52, %v61
    %v63 = vld [vmem:[#allocation6] sm:$0xff]
    %v64 = vpack.c.bf16 %v62, %v62
    %v65 = vld [vmem:[#allocation4] sm:$0xf]
    %v66 = vld [vmem:[#allocation4 + $0x4] sm:$0xf]
    %v67 = vld [vmem:[#allocation4 + $0x8] sm:$0xf]
    %v68 = vld [vmem:[#allocation4 + $0xc] sm:$0xf]
    %v69 = vlaneseq
    %v70 = vshrl.u32 %v69, 7
    %v71 = vsub.s32 0, %v70
    %v72 = vrot.slane %v63, %v71
    %v77 = vunpack.c.l.b16 %v65
    %v78 = vunpack.c.l.b16 %v66
    %v79 = vunpack.c.l.b16 %v67
    %v80 = vunpack.c.l.b16 %v68
    %v81 = vpack.c.b16 %v78, %v77
    %v82 = vpack.c.b16 %v80, %v79
    %vm85 = vcmask 261120
    %v87 = vsel %vm85, %v64, 0
    %89 = vmatprep.subr.bf16.mxu0 0
    %90 = vmatpush1.bf16.msra.mxu0 %v81
    %91 = vmatprep.subr.bf16.mxu0 0
    %92 = vmatpush1.bf16.msra.mxu0 %v82
    %93 = vmatprep.subr.bf16.mxu0 0
    %94 = vmatpush1.bf16.msra.mxu0 0
    %95 = vmatprep.subr.bf16.mxu0 0
    %96 = vmatpush1.bf16.msra.mxu0 0
    %97 = vmatprep.subr.bf16.mxu0 0
    %98 = vmatpush1.bf16.msra.mxu0 0
    %99 = vmatprep.subr.bf16.mxu0 0
    %100 = vmatpush1.bf16.msra.mxu0 0
    %101 = vmatprep.subr.bf16.mxu0 0
    %102 = vmatpush1.bf16.msra.mxu0 0
    %103 = vmatprep.subr.bf16.mxu0 0
    %104 = vmatpush1.bf16.msra.mxu0 0
    %105 = vmatprep.subr.bf16.mxu0 0
    %106 = vmatpush1.bf16.msra.mxu0 0
    %107 = vmatprep.subr.bf16.mxu0 0
    %108 = vmatpush1.bf16.msra.mxu0 0
    %109 = vmatprep.subr.bf16.mxu0 0
    %110 = vmatpush1.bf16.msra.mxu0 0
    %111 = vmatprep.subr.bf16.mxu0 0
    %112 = vmatpush1.bf16.msra.mxu0 0
    %113 = vmatprep.subr.bf16.mxu0 0
    %114 = vmatpush1.bf16.msra.mxu0 0
    %115 = vmatprep.subr.bf16.mxu0 0
    %116 = vmatpush1.bf16.msra.mxu0 0
    %117 = vmatprep.subr.bf16.mxu0 0
    %118 = vmatpush1.bf16.msra.mxu0 0
    %119 = vmatprep.subr.bf16.mxu0 0
    %120 = vmatpush1.bf16.msra.mxu0 0
    %121 = vmatprep.mubr.bf16.mxu0 0
    %122 = vmatmul.mubr.bf16.gmra.mrb[0].mxu0 %v87
    %v123 = vpop.f32.mrb[0].mxu0
    %v124 = vadd.f32 %v72, %v123
    %v125 = vpop.f32.mrb[0].mxu0
    %v126 = vpop.f32.mrb[0].mxu0
    %v127 = vpop.f32.mrb[0].mxu0
    %128 = vdwg.mxu0
    %v129 = vmul.f32 %v124, 0.2
    %v130 = vmax.f32 %v124, %v129
    %v131 = vpack.c.bf16 %v130, %v130
    %s132 = scalar_lea.vmem [#allocation4], 16
    %v133 = vld [vmem:[%s132] sm:$0xf]
    %v134 = vld [vmem:[%s132 + $0x4] sm:$0xf]
    %v135 = vld [vmem:[%s132 + $0x8] sm:$0xf]
    %v136 = vld [vmem:[%s132 + $0xc] sm:$0xf]
    %v137 = vlaneseq
    %v138 = vshrl.u32 %v137, 7
    %v139 = vsub.s32 1, %v138
    %v140 = vrot.slane %v63, %v139
    %v145 = vunpack.c.l.b16 %v133
    %v146 = vunpack.c.l.b16 %v134
    %v147 = vunpack.c.l.b16 %v135
    %v148 = vunpack.c.l.b16 %v136
    %v149 = vpack.c.b16 %v146, %v145
    %v150 = vpack.c.b16 %v148, %v147
    %v154 = vsel %vm85, %v131, 0
    %156 = vmatprep.subr.bf16.mxu0 0
    %157 = vmatpush1.bf16.msra.mxu0 %v149
    %158 = vmatprep.subr.bf16.mxu0 0
    %159 = vmatpush1.bf16.msra.mxu0 %v150
    %160 = vmatprep.subr.bf16.mxu0 0
    %161 = vmatpush1.bf16.msra.mxu0 0
    %162 = vmatprep.subr.bf16.mxu0 0
    %163 = vmatpush1.bf16.msra.mxu0 0
    %164 = vmatprep.subr.bf16.mxu0 0
    %165 = vmatpush1.bf16.msra.mxu0 0
    %166 = vmatprep.subr.bf16.mxu0 0
    %167 = vmatpush1.bf16.msra.mxu0 0
    %168 = vmatprep.subr.bf16.mxu0 0
    %169 = vmatpush1.bf16.msra.mxu0 0
    %170 = vmatprep.subr.bf16.mxu0 0
    %171 = vmatpush1.bf16.msra.mxu0 0
    %172 = vmatprep.subr.bf16.mxu0 0
    %173 = vmatpush1.bf16.msra.mxu0 0
    %174 = vmatprep.subr.bf16.mxu0 0
    %175 = vmatpush1.bf16.msra.mxu0 0
    %176 = vmatprep.subr.bf16.mxu0 0
    %177 = vmatpush1.bf16.msra.mxu0 0
    %178 = vmatprep.subr.bf16.mxu0 0
    %179 = vmatpush1.bf16.msra.mxu0 0
    %180 = vmatprep.subr.bf16.mxu0 0
    %181 = vmatpush1.bf16.msra.mxu0 0
    %182 = vmatprep.subr.bf16.mxu0 0
    %183 = vmatpush1.bf16.msra.mxu0 0
    %184 = vmatprep.subr.bf16.mxu0 0
    %185 = vmatpush1.bf16.msra.mxu0 0
    %186 = vmatprep.subr.bf16.mxu0 0
    %187 = vmatpush1.bf16.msra.mxu0 0
    %188 = vmatprep.mubr.bf16.mxu0 0
    %189 = vmatmul.mubr.bf16.gmra.mrb[0].mxu0 %v154
    %v190 = vpop.f32.mrb[0].mxu0
    %v191 = vadd.f32 %v140, %v190
    %v192 = vpop.f32.mrb[0].mxu0
    %v193 = vpop.f32.mrb[0].mxu0
    %v194 = vpop.f32.mrb[0].mxu0
    %195 = vdwg.mxu0
    %v196 = vmul.f32 %v191, 0.2
    %v197 = vmax.f32 %v191, %v196
    %v198 = vpack.c.bf16 %v197, %v197
    %s199 = scalar_lea.vmem [#allocation4], 32
    %v200 = vld [vmem:[%s199] sm:$0xf]
    %v201 = vld [vmem:[%s199 + $0x4] sm:$0xf]
    %v202 = vld [vmem:[%s199 + $0x8] sm:$0xf]
    %v203 = vld [vmem:[%s199 + $0xc] sm:$0xf]
    %v204 = vlaneseq
    %v205 = vshrl.u32 %v204, 7
    %v206 = vsub.s32 2, %v205
    %v207 = vrot.slane %v63, %v206
    %v212 = vunpack.c.l.b16 %v200
    %v213 = vunpack.c.l.b16 %v201
    %v214 = vunpack.c.l.b16 %v202
    %v215 = vunpack.c.l.b16 %v203
    %v216 = vpack.c.b16 %v213, %v212
    %v217 = vpack.c.b16 %v215, %v214
    %v221 = vsel %vm85, %v198, 0
    %223 = vmatprep.subr.bf16.mxu0 0
    %224 = vmatpush1.bf16.msra.mxu0 %v216
    %225 = vmatprep.subr.bf16.mxu0 0
    %226 = vmatpush1.bf16.msra.mxu0 %v217
    %227 = vmatprep.subr.bf16.mxu0 0
    %228 = vmatpush1.bf16.msra.mxu0 0
    %229 = vmatprep.subr.bf16.mxu0 0
    %230 = vmatpush1.bf16.msra.mxu0 0
    %231 = vmatprep.subr.bf16.mxu0 0
    %232 = vmatpush1.bf16.msra.mxu0 0
    %233 = vmatprep.subr.bf16.mxu0 0
    %234 = vmatpush1.bf16.msra.mxu0 0
    %235 = vmatprep.subr.bf16.mxu0 0
    %236 = vmatpush1.bf16.msra.mxu0 0
    %237 = vmatprep.subr.bf16.mxu0 0
    %238 = vmatpush1.bf16.msra.mxu0 0
    %239 = vmatprep.subr.bf16.mxu0 0
    %240 = vmatpush1.bf16.msra.mxu0 0
    %241 = vmatprep.subr.bf16.mxu0 0
    %242 = vmatpush1.bf16.msra.mxu0 0
    %243 = vmatprep.subr.bf16.mxu0 0
    %244 = vmatpush1.bf16.msra.mxu0 0
    %245 = vmatprep.subr.bf16.mxu0 0
    %246 = vmatpush1.bf16.msra.mxu0 0
    %247 = vmatprep.subr.bf16.mxu0 0
    %248 = vmatpush1.bf16.msra.mxu0 0
    %249 = vmatprep.subr.bf16.mxu0 0
    %250 = vmatpush1.bf16.msra.mxu0 0
    %251 = vmatprep.subr.bf16.mxu0 0
    %252 = vmatpush1.bf16.msra.mxu0 0
    %253 = vmatprep.subr.bf16.mxu0 0
    %254 = vmatpush1.bf16.msra.mxu0 0
    %255 = vmatprep.mubr.bf16.mxu0 0
    %256 = vmatmul.mubr.bf16.gmra.mrb[0].mxu0 %v221
    %v257 = vpop.f32.mrb[0].mxu0
    %v258 = vadd.f32 %v207, %v257
    %v259 = vpop.f32.mrb[0].mxu0
    %v260 = vpop.f32.mrb[0].mxu0
    %v261 = vpop.f32.mrb[0].mxu0
    %262 = vdwg.mxu0
    %v263 = vmul.f32 %v258, 0.2
    %v264 = vmax.f32 %v258, %v263
    %v265 = vpack.c.bf16 %v264, %v264
    %s266 = scalar_lea.vmem [#allocation4], 48
    %v267 = vld [vmem:[%s266] sm:$0xf]
    %v268 = vld [vmem:[%s266 + $0x4] sm:$0xf]
    %v269 = vld [vmem:[%s266 + $0x8] sm:$0xf]
    %v270 = vld [vmem:[%s266 + $0xc] sm:$0xf]
    %v271 = vlaneseq
    %v272 = vshrl.u32 %v271, 7
    %v273 = vsub.s32 3, %v272
    %v274 = vrot.slane %v63, %v273
    %v279 = vunpack.c.l.b16 %v267
    %v280 = vunpack.c.l.b16 %v268
    %v281 = vunpack.c.l.b16 %v269
    %v282 = vunpack.c.l.b16 %v270
    %v283 = vpack.c.b16 %v280, %v279
    %v284 = vpack.c.b16 %v282, %v281
    %v288 = vsel %vm85, %v265, 0
    %290 = vmatprep.subr.bf16.mxu0 0
    %291 = vmatpush1.bf16.msra.mxu0 %v283
    %292 = vmatprep.subr.bf16.mxu0 0
    %293 = vmatpush1.bf16.msra.mxu0 %v284
    %294 = vmatprep.subr.bf16.mxu0 0
    %295 = vmatpush1.bf16.msra.mxu0 0
    %296 = vmatprep.subr.bf16.mxu0 0
    %297 = vmatpush1.bf16.msra.mxu0 0
    %298 = vmatprep.subr.bf16.mxu0 0
    %299 = vmatpush1.bf16.msra.mxu0 0
    %300 = vmatprep.subr.bf16.mxu0 0
    %301 = vmatpush1.bf16.msra.mxu0 0
    %302 = vmatprep.subr.bf16.mxu0 0
    %303 = vmatpush1.bf16.msra.mxu0 0
    %304 = vmatprep.subr.bf16.mxu0 0
    %305 = vmatpush1.bf16.msra.mxu0 0
    %306 = vmatprep.subr.bf16.mxu0 0
    %307 = vmatpush1.bf16.msra.mxu0 0
    %308 = vmatprep.subr.bf16.mxu0 0
    %309 = vmatpush1.bf16.msra.mxu0 0
    %310 = vmatprep.subr.bf16.mxu0 0
    %311 = vmatpush1.bf16.msra.mxu0 0
    %312 = vmatprep.subr.bf16.mxu0 0
    %313 = vmatpush1.bf16.msra.mxu0 0
    %314 = vmatprep.subr.bf16.mxu0 0
    %315 = vmatpush1.bf16.msra.mxu0 0
    %316 = vmatprep.subr.bf16.mxu0 0
    %317 = vmatpush1.bf16.msra.mxu0 0
    %318 = vmatprep.subr.bf16.mxu0 0
    %319 = vmatpush1.bf16.msra.mxu0 0
    %320 = vmatprep.subr.bf16.mxu0 0
    %321 = vmatpush1.bf16.msra.mxu0 0
    %322 = vmatprep.mubr.bf16.mxu0 0
    %323 = vmatmul.mubr.bf16.gmra.mrb[0].mxu0 %v288
    %v324 = vpop.f32.mrb[0].mxu0
    %v325 = vadd.f32 %v274, %v324
    %v326 = vpop.f32.mrb[0].mxu0
    %v327 = vpop.f32.mrb[0].mxu0
    %v328 = vpop.f32.mrb[0].mxu0
    %329 = vdwg.mxu0
    %v330 = vmul.f32 %v325, 0.2
    %v331 = vmax.f32 %v325, %v330
    %v332 = vpack.c.bf16 %v331, %v331
    %s333 = scalar_lea.vmem [#allocation4], 64
    %v334 = vld [vmem:[%s333] sm:$0xf]
    %v335 = vld [vmem:[%s333 + $0x4] sm:$0xf]
    %v336 = vld [vmem:[%s333 + $0x8] sm:$0xf]
    %v337 = vld [vmem:[%s333 + $0xc] sm:$0xf]
    %v338 = vlaneseq
    %v339 = vshrl.u32 %v338, 7
    %v340 = vsub.s32 4, %v339
    %v341 = vrot.slane %v63, %v340
    %v346 = vunpack.c.l.b16 %v334
    %v347 = vunpack.c.l.b16 %v335
    %v348 = vunpack.c.l.b16 %v336
    %v349 = vunpack.c.l.b16 %v337
    %v350 = vpack.c.b16 %v347, %v346
    %v351 = vpack.c.b16 %v349, %v348
    %v355 = vsel %vm85, %v332, 0
    %357 = vmatprep.subr.bf16.mxu0 0
    %358 = vmatpush1.bf16.msra.mxu0 %v350
    %359 = vmatprep.subr.bf16.mxu0 0
    %360 = vmatpush1.bf16.msra.mxu0 %v351
    %361 = vmatprep.subr.bf16.mxu0 0
    %362 = vmatpush1.bf16.msra.mxu0 0
    %363 = vmatprep.subr.bf16.mxu0 0
    %364 = vmatpush1.bf16.msra.mxu0 0
    %365 = vmatprep.subr.bf16.mxu0 0
    %366 = vmatpush1.bf16.msra.mxu0 0
    %367 = vmatprep.subr.bf16.mxu0 0
    %368 = vmatpush1.bf16.msra.mxu0 0
    %369 = vmatprep.subr.bf16.mxu0 0
    %370 = vmatpush1.bf16.msra.mxu0 0
    %371 = vmatprep.subr.bf16.mxu0 0
    %372 = vmatpush1.bf16.msra.mxu0 0
    %373 = vmatprep.subr.bf16.mxu0 0
    %374 = vmatpush1.bf16.msra.mxu0 0
    %375 = vmatprep.subr.bf16.mxu0 0
    %376 = vmatpush1.bf16.msra.mxu0 0
    %377 = vmatprep.subr.bf16.mxu0 0
    %378 = vmatpush1.bf16.msra.mxu0 0
    %379 = vmatprep.subr.bf16.mxu0 0
    %380 = vmatpush1.bf16.msra.mxu0 0
    %381 = vmatprep.subr.bf16.mxu0 0
    %382 = vmatpush1.bf16.msra.mxu0 0
    %383 = vmatprep.subr.bf16.mxu0 0
    %384 = vmatpush1.bf16.msra.mxu0 0
    %385 = vmatprep.subr.bf16.mxu0 0
    %386 = vmatpush1.bf16.msra.mxu0 0
    %387 = vmatprep.subr.bf16.mxu0 0
    %388 = vmatpush1.bf16.msra.mxu0 0
    %389 = vmatprep.mubr.bf16.mxu0 0
    %390 = vmatmul.mubr.bf16.gmra.mrb[0].mxu0 %v355
    %v391 = vpop.f32.mrb[0].mxu0
    %v392 = vadd.f32 %v341, %v391
    %v393 = vpop.f32.mrb[0].mxu0
    %v394 = vpop.f32.mrb[0].mxu0
    %v395 = vpop.f32.mrb[0].mxu0
    %396 = vdwg.mxu0
    %v397 = vmul.f32 %v392, 0.2
    %v398 = vmax.f32 %v392, %v397
    %v399 = vpack.c.bf16 %v398, %v398
    %s400 = scalar_lea.vmem [#allocation4], 80
    %v401 = vld [vmem:[%s400] sm:$0xf]
    %v402 = vld [vmem:[%s400 + $0x4] sm:$0xf]
    %v403 = vld [vmem:[%s400 + $0x8] sm:$0xf]
    %v404 = vld [vmem:[%s400 + $0xc] sm:$0xf]
    %v405 = vlaneseq
    %v406 = vshrl.u32 %v405, 7
    %v407 = vsub.s32 5, %v406
    %v408 = vrot.slane %v63, %v407
    %v413 = vunpack.c.l.b16 %v401
    %v414 = vunpack.c.l.b16 %v402
    %v415 = vunpack.c.l.b16 %v403
    %v416 = vunpack.c.l.b16 %v404
    %v417 = vpack.c.b16 %v414, %v413
    %v418 = vpack.c.b16 %v416, %v415
    %v422 = vsel %vm85, %v399, 0
    %424 = vmatprep.subr.bf16.mxu0 0
    %425 = vmatpush1.bf16.msra.mxu0 %v417
    %426 = vmatprep.subr.bf16.mxu0 0
    %427 = vmatpush1.bf16.msra.mxu0 %v418
    %428 = vmatprep.subr.bf16.mxu0 0
    %429 = vmatpush1.bf16.msra.mxu0 0
    %430 = vmatprep.subr.bf16.mxu0 0
    %431 = vmatpush1.bf16.msra.mxu0 0
    %432 = vmatprep.subr.bf16.mxu0 0
    %433 = vmatpush1.bf16.msra.mxu0 0
    %434 = vmatprep.subr.bf16.mxu0 0
    %435 = vmatpush1.bf16.msra.mxu0 0
    %436 = vmatprep.subr.bf16.mxu0 0
    %437 = vmatpush1.bf16.msra.mxu0 0
    %438 = vmatprep.subr.bf16.mxu0 0
    %439 = vmatpush1.bf16.msra.mxu0 0
    %440 = vmatprep.subr.bf16.mxu0 0
    %441 = vmatpush1.bf16.msra.mxu0 0
    %442 = vmatprep.subr.bf16.mxu0 0
    %443 = vmatpush1.bf16.msra.mxu0 0
    %444 = vmatprep.subr.bf16.mxu0 0
    %445 = vmatpush1.bf16.msra.mxu0 0
    %446 = vmatprep.subr.bf16.mxu0 0
    %447 = vmatpush1.bf16.msra.mxu0 0
    %448 = vmatprep.subr.bf16.mxu0 0
    %449 = vmatpush1.bf16.msra.mxu0 0
    %450 = vmatprep.subr.bf16.mxu0 0
    %451 = vmatpush1.bf16.msra.mxu0 0
    %452 = vmatprep.subr.bf16.mxu0 0
    %453 = vmatpush1.bf16.msra.mxu0 0
    %454 = vmatprep.subr.bf16.mxu0 0
    %455 = vmatpush1.bf16.msra.mxu0 0
    %456 = vmatprep.mubr.bf16.mxu0 0
    %457 = vmatmul.mubr.bf16.gmra.mrb[0].mxu0 %v422
    %v458 = vpop.f32.mrb[0].mxu0
    %v459 = vadd.f32 %v408, %v458
    %v460 = vpop.f32.mrb[0].mxu0
    %v461 = vpop.f32.mrb[0].mxu0
    %v462 = vpop.f32.mrb[0].mxu0
    %463 = vdwg.mxu0
    %v464 = vmul.f32 %v459, 0.2
    %v465 = vmax.f32 %v459, %v464
    %v466 = vpack.c.bf16 %v465, %v465
    %s467 = scalar_lea.vmem [#allocation4], 96
    %v468 = vld [vmem:[%s467] sm:$0xf]
    %v469 = vld [vmem:[%s467 + $0x4] sm:$0xf]
    %v470 = vld [vmem:[%s467 + $0x8] sm:$0xf]
    %v471 = vld [vmem:[%s467 + $0xc] sm:$0xf]
    %v472 = vlaneseq
    %v473 = vshrl.u32 %v472, 7
    %v474 = vsub.s32 6, %v473
    %v475 = vrot.slane %v63, %v474
    %v480 = vunpack.c.l.b16 %v468
    %v481 = vunpack.c.l.b16 %v469
    %v482 = vunpack.c.l.b16 %v470
    %v483 = vunpack.c.l.b16 %v471
    %v484 = vpack.c.b16 %v481, %v480
    %v485 = vpack.c.b16 %v483, %v482
    %v489 = vsel %vm85, %v466, 0
    %491 = vmatprep.subr.bf16.mxu0 0
    %492 = vmatpush1.bf16.msra.mxu0 %v484
    %493 = vmatprep.subr.bf16.mxu0 0
    %494 = vmatpush1.bf16.msra.mxu0 %v485
    %495 = vmatprep.subr.bf16.mxu0 0
    %496 = vmatpush1.bf16.msra.mxu0 0
    %497 = vmatprep.subr.bf16.mxu0 0
    %498 = vmatpush1.bf16.msra.mxu0 0
    %499 = vmatprep.subr.bf16.mxu0 0
    %500 = vmatpush1.bf16.msra.mxu0 0
    %501 = vmatprep.subr.bf16.mxu0 0
    %502 = vmatpush1.bf16.msra.mxu0 0
    %503 = vmatprep.subr.bf16.mxu0 0
    %504 = vmatpush1.bf16.msra.mxu0 0
    %505 = vmatprep.subr.bf16.mxu0 0
    %506 = vmatpush1.bf16.msra.mxu0 0
    %507 = vmatprep.subr.bf16.mxu0 0
    %508 = vmatpush1.bf16.msra.mxu0 0
    %509 = vmatprep.subr.bf16.mxu0 0
    %510 = vmatpush1.bf16.msra.mxu0 0
    %511 = vmatprep.subr.bf16.mxu0 0
    %512 = vmatpush1.bf16.msra.mxu0 0
    %513 = vmatprep.subr.bf16.mxu0 0
    %514 = vmatpush1.bf16.msra.mxu0 0
    %515 = vmatprep.subr.bf16.mxu0 0
    %516 = vmatpush1.bf16.msra.mxu0 0
    %517 = vmatprep.subr.bf16.mxu0 0
    %518 = vmatpush1.bf16.msra.mxu0 0
    %519 = vmatprep.subr.bf16.mxu0 0
    %520 = vmatpush1.bf16.msra.mxu0 0
    %521 = vmatprep.subr.bf16.mxu0 0
    %522 = vmatpush1.bf16.msra.mxu0 0
    %523 = vmatprep.mubr.bf16.mxu0 0
    %524 = vmatmul.mubr.bf16.gmra.mrb[0].mxu0 %v489
    %v525 = vpop.f32.mrb[0].mxu0
    %v526 = vadd.f32 %v475, %v525
    %v527 = vpop.f32.mrb[0].mxu0
    %v528 = vpop.f32.mrb[0].mxu0
    %v529 = vpop.f32.mrb[0].mxu0
    %530 = vdwg.mxu0
    %v531 = vmul.f32 %v526, 0.2
    %v532 = vmax.f32 %v526, %v531
    %v533 = vpack.c.bf16 %v532, %v532
    %s534 = scalar_lea.vmem [#allocation4], 112
    %v535 = vld [vmem:[%s534] sm:$0xf]
    %v536 = vld [vmem:[%s534 + $0x4] sm:$0xf]
    %v537 = vld [vmem:[%s534 + $0x8] sm:$0xf]
    %v538 = vld [vmem:[%s534 + $0xc] sm:$0xf]
    %v539 = vlaneseq
    %v540 = vshrl.u32 %v539, 7
    %v541 = vsub.s32 7, %v540
    %v542 = vrot.slane %v63, %v541
    %v547 = vunpack.c.l.b16 %v535
    %v548 = vunpack.c.l.b16 %v536
    %v549 = vunpack.c.l.b16 %v537
    %v550 = vunpack.c.l.b16 %v538
    %v551 = vpack.c.b16 %v548, %v547
    %v552 = vpack.c.b16 %v550, %v549
    %v556 = vsel %vm85, %v533, 0
    %558 = vmatprep.subr.bf16.mxu0 0
    %559 = vmatpush1.bf16.msra.mxu0 %v551
    %560 = vmatprep.subr.bf16.mxu0 0
    %561 = vmatpush1.bf16.msra.mxu0 %v552
    %562 = vmatprep.subr.bf16.mxu0 0
    %563 = vmatpush1.bf16.msra.mxu0 0
    %564 = vmatprep.subr.bf16.mxu0 0
    %565 = vmatpush1.bf16.msra.mxu0 0
    %566 = vmatprep.subr.bf16.mxu0 0
    %567 = vmatpush1.bf16.msra.mxu0 0
    %568 = vmatprep.subr.bf16.mxu0 0
    %569 = vmatpush1.bf16.msra.mxu0 0
    %570 = vmatprep.subr.bf16.mxu0 0
    %571 = vmatpush1.bf16.msra.mxu0 0
    %572 = vmatprep.subr.bf16.mxu0 0
    %573 = vmatpush1.bf16.msra.mxu0 0
    %574 = vmatprep.subr.bf16.mxu0 0
    %575 = vmatpush1.bf16.msra.mxu0 0
    %576 = vmatprep.subr.bf16.mxu0 0
    %577 = vmatpush1.bf16.msra.mxu0 0
    %578 = vmatprep.subr.bf16.mxu0 0
    %579 = vmatpush1.bf16.msra.mxu0 0
    %580 = vmatprep.subr.bf16.mxu0 0
    %581 = vmatpush1.bf16.msra.mxu0 0
    %582 = vmatprep.subr.bf16.mxu0 0
    %583 = vmatpush1.bf16.msra.mxu0 0
    %584 = vmatprep.subr.bf16.mxu0 0
    %585 = vmatpush1.bf16.msra.mxu0 0
    %586 = vmatprep.subr.bf16.mxu0 0
    %587 = vmatpush1.bf16.msra.mxu0 0
    %588 = vmatprep.subr.bf16.mxu0 0
    %589 = vmatpush1.bf16.msra.mxu0 0
    %590 = vmatprep.mubr.bf16.mxu0 0
    %591 = vmatmul.mubr.bf16.gmra.mrb[0].mxu0 %v556
    %v592 = vpop.f32.mrb[0].mxu0
    %v593 = vadd.f32 %v542, %v592
    %v594 = vpop.f32.mrb[0].mxu0
    %v595 = vpop.f32.mrb[0].mxu0
    %v596 = vpop.f32.mrb[0].mxu0
    %597 = vdwg.mxu0
    %v598 = vmul.f32 %v593, 0.2
    %v599 = vmax.f32 %v593, %v598
    %600 = vst.msk [vmem:[%s3] sm:$0x3] %vm54, %v599
    // Predicated region
    $region26: #{mapping_network.1} parent=1 // pred_check
      _
    $region27: #{mapping_network.1} parent=1 // pred_check_branch
      %602 = sbr.rel (0) target = $region29
    $region28: #{mapping_network.1} parent=1 // pred_region
      _
    $region29: #{mapping_network.1} parent=1 // pred_fallthru
      _
    // Predicated region
    $region30: #{mapping_network.1} parent=1 // pred_check
      _
    $region31: #{mapping_network.1} parent=1 // pred_check_branch
      %604 = sbr.rel (0) target = $region33
    $region32: #{mapping_network.1} parent=1 // pred_region
      _
    $region33: #{mapping_network.1} parent=1 // pred_fallthru
      _
    %605 = vsyncpa [#allocation3], 1
    %606 = vsyncpa [#allocation5], 1

</llo_original>
